<compile_context>
chip_gen: v5e
topology: v5e:2x2
jax: 0.10.0
libtpu: 0.0.40
codegen_flags: <defaults>
</compile_context>

<pallas_src>
import functools

import jax
import jax.numpy as jnp
from jax.experimental import pallas as pl
from jax.experimental.pallas import tpu as pltpu

_LANE = 128
_F32 = 4
_OVERHEAD_BYTES = 2 << 20   # headroom for compiler-internal scratch


def _vmem_limits():
    """Generation-aware VMEM limit / working-set budget (v5e/v6e 128 MiB, v7x 64 MiB)."""
    cap = None
    try:
        cap = getattr(pltpu.get_tpu_info(), "vmem_capacity_bytes", None)
    except Exception:
        cap = None
    if not cap:
        cap = 64 * 1024 * 1024          # conservative fallback (v7x-sized)
    limit = min(int(cap * 0.80), cap - (4 << 20))
    budget = int(cap * 0.70)
    return limit, budget


_VMEM_LIMIT_BYTES, _VMEM_BUDGET_BYTES = _vmem_limits()


def _round_up(x, m):
    return ((x + m - 1) // m) * m


def _round_down_mult(x, m):
    return max(m, (x // m) * m)


# ------------------------------- kernels --------------------------------------


def _mlm_resident_kernel(x_ref, w_ref, b_ref, o_ref, *, compute_dtype):
    """One (batch, seq-tile) grid step with the whole (V, H) weight resident in VMEM.

    x_ref: (1, H, TS)  activation tile, read directly from (B, H, S); cast in-kernel
    w_ref: (V, H)      resident nn.Linear weight (PyTorch layout), compute dtype
    b_ref: (V, 1)      f32 resident nn.Linear bias
    o_ref: (1, V, TS)  log-prob tile, stored directly into (B, V, S)
    """
    x = x_ref[0].astype(compute_dtype)                      # in-kernel cast (no wrapper round-trip)
    logits = jnp.dot(w_ref[...], x, preferred_element_type=jnp.float32)   # (V, TS) f32
    logits = logits + b_ref[...]                            # (V, 1) broadcast over TS

    # Numerically stable log-softmax over the vocab (sublane) axis, all f32.
    m = jnp.max(logits, axis=0, keepdims=True)              # (1, TS)
    shifted = logits - m
    lse = jnp.log(jnp.sum(jnp.exp(shifted), axis=0, keepdims=True))
    o_ref[0] = (shifted - lse).astype(o_ref.dtype)


def _mlm_stream_kernel(x_ref, w_ref, b_ref, o_ref, logits_ref, m_ref, l_ref,
                       *, compute_dtype, v_total, v_tile):
    """Vocab-streaming path: grid = (B, seq_tiles, vocab_tiles), vocab innermost.

    x_ref:      (1, H, TS)  activation tile (same block across the vocab axis)
    w_ref:      (TV, H)     streamed weight block
    b_ref:      (TV, 1)     f32 streamed bias block
    o_ref:      (1, V, TS)  output tile, resident across the vocab axis
    logits_ref: (n_kv, TV, TS) f32 scratch holding all logit chunks of this tile
    m_ref/l_ref:(1, TS)     f32 running max / running sum-exp (online softmax)
    """
    kv = pl.program_id(2)
    n_kv = pl.num_programs(2)

    @pl.when(kv == 0)
    def _():
        m_ref[...] = jnp.full(m_ref.shape, -jnp.inf, m_ref.dtype)
        l_ref[...] = jnp.zeros(l_ref.shape, l_ref.dtype)

    x = x_ref[0].astype(compute_dtype)                                   # (H, TS)
    chunk = jnp.dot(w_ref[...], x, preferred_element_type=jnp.float32)   # (TV, TS)
    chunk = chunk + b_ref[...]

    n_full = v_total // v_tile
    rem = v_total - n_full * v_tile
    if rem:
        # Mask padded vocab rows of the last (partial) weight block.
        row = kv * v_tile + jax.lax.broadcasted_iota(jnp.int32, chunk.shape, 0)
        chunk = jnp.where(row < v_total, chunk, -1e30)

    logits_ref[kv] = chunk                                               # stash chunk

    # Online max / sum-exp (flash-attention style rescale), per column.
    m_prev = m_ref[...]
    m_new = jnp.maximum(m_prev, jnp.max(chunk, axis=0, keepdims=True))
    l_ref[...] = (l_ref[...] * jnp.exp(m_prev - m_new)
                  + jnp.sum(jnp.exp(chunk - m_new), axis=0, keepdims=True))
    m_ref[...] = m_new

    @pl.when(kv == n_kv - 1)
    def _():
        off = m_ref[...] + jnp.log(l_ref[...])                           # (1, TS)
        # Finalize chunk-by-chunk (static python loop -> static slices, bounded
        # f32 temporaries of size (TV, TS)).
        for i in range(n_full):
            o_ref[0, i * v_tile:(i + 1) * v_tile, :] = (
                logits_ref[i] - off).astype(o_ref.dtype)
        if rem:
            o_ref[0, n_full * v_tile:v_total, :] = (
                logits_ref[n_full, :rem, :] - off).astype(o_ref.dtype)


# ---------------------------- tile planning ------------------------------------


def _resident_bytes(H, V, ts, w_isz, x_isz, o_isz):
    resident = V * H * w_isz + _round_up(V, 8) * _LANE * _F32   # weight + lane-padded bias
    x_buf = 2 * H * ts * x_isz                                  # double-buffered input tile
    o_buf = 2 * V * ts * o_isz                                  # double-buffered output tile
    temps = 3 * V * ts * _F32                                   # logits / shifted / exp
    return resident + x_buf + o_buf + temps + _OVERHEAD_BYTES


def _stream_bytes(H, V, ts, tv, w_isz, x_isz, o_isz):
    n_kv = pl.cdiv(V, tv)
    scratch = n_kv * tv * ts * _F32 + 2 * 8 * ts * _F32         # logits scratch + m/l
    w_buf = 2 * tv * H * w_isz
    b_buf = 2 * _round_up(tv, 8) * _LANE * _F32                 # lane-padded bias block
    x_buf = 2 * H * ts * x_isz
    o_buf = 2 * V * ts * o_isz
    temps = 3 * tv * ts * _F32
    return scratch + w_buf + b_buf + x_buf + o_buf + temps + _OVERHEAD_BYTES


def _plan_tiles(B, H, S_eff, V, w_isz, x_isz, o_isz, seq_tile, vocab_tile, budget):
    """Returns (mode, seq_tile, vocab_tile_or_None)."""
    max_ts = min(_round_down_mult(max(seq_tile, _LANE), _LANE),
                 _round_down_mult(S_eff, _LANE))
    ts_candidates = list(range(max_ts, _LANE - 1, -_LANE))

    force_stream = (vocab_tile is not None) and (vocab_tile < V)

    if not force_stream:
        for ts in ts_candidates:
            if _resident_bytes(H, V, ts, w_isz, x_isz, o_isz) <= budget:
                # v7x has 2 TensorCores sharing the parallel grid; if the whole
                # parallel grid would be a single step (B == 1, one seq tile),
                # split S in two so both cores get work.
                if B == 1 and ts >= S_eff and S_eff >= 2 * _LANE:
                    ts = _round_up(pl.cdiv(S_eff, 2), _LANE)
                return "resident", ts, None

    # Vocab-streaming path (resident weight does not fit, or streaming forced).
    if vocab_tile is not None:
        tv_candidates = [min(_round_up(max(vocab_tile, 8), 8), _round_up(V, 8))]
    else:
        vcap = _round_up(V, _LANE)
        tv_candidates = [t for t in (2048, 1024, 512, 256, 128) if t <= vcap]
        if not tv_candidates:
            tv_candidates = [_round_up(V, 8)]

    for ts in ts_candidates:          # prefer largest ts: weight is re-streamed per seq tile
        for tv in tv_candidates:      # then the largest weight chunk that fits
            if _stream_bytes(H, V, ts, tv, w_isz, x_isz, o_isz) <= budget:
                return "stream", ts, tv

    raise ValueError(
        "MaskedLanguageModel kernel: even the minimal streamed configuration "
        f"exceeds the {_VMEM_BUDGET_BYTES >> 20} MiB VMEM budget "
        f"(H={H}, V={V}).")


# ------------------------------- wrapper ---------------------------------------


@functools.partial(jax.jit,
                   static_argnames=("seq_tile", "vocab_tile", "out_dtype", "use_bf16"))
def masked_language_model(x, weight, bias, *, seq_tile=512, vocab_tile=None,
                          out_dtype=jnp.float32, use_bf16=True):
    """Forward pass of MaskedLanguageModel.

    Args:
      x:      (B, H, S) activations (the PyTorch forward's input layout).
      weight: (V, H) nn.Linear weight (out_features, in_features). Pass it already
        cast to bf16 when use_bf16=True to avoid a per-call V*H HBM round-trip.
      bias:   (V,)   nn.Linear bias.
      seq_tile: requested token tile along S (rounded down to a multiple of 128).
      vocab_tile: force the vocab-streaming path with this weight-chunk size
        (auto-selected when the resident weight does not fit VMEM).
      out_dtype: dtype of the returned log-probs. f32 matches PyTorch exactly, but
        the (B, V, S) output write dominates HBM traffic — bf16 is the recommended
        fast path (roughly halves the dominant stream, esp. on v6e).
      use_bf16: run the MXU in bf16 (f32 accumulation & softmax). x is cast
        inside the kernel; no wrapper-side activation round-trip.

    Returns:
      (B, V, S) log-probabilities in `out_dtype`.
    """
    B, H, S = x.shape
    V, H_w = weight.shape
    assert H_w == H, (weight.shape, x.shape)

    compute_dtype = jnp.bfloat16 if use_bf16 else jnp.float32
    # Cast the weight only if needed (callers should pre-cast to avoid the round-trip).
    w_k = weight if weight.dtype == compute_dtype else weight.astype(compute_dtype)
    b_k = bias.astype(jnp.float32).reshape(V, 1)
    x_k = x                                            # cast to bf16 happens in-kernel

    # Pad short sequences up to one full lane so (V, ts) stores stay lane-dense.
    S_eff = S
    if S < _LANE:
        S_eff = _LANE
        x_k = jnp.pad(x_k, ((0, 0), (0, 0), (0, S_eff - S)))

    w_isz = jnp.dtype(compute_dtype).itemsize
    x_isz = jnp.dtype(x_k.dtype).itemsize
    o_isz = jnp.dtype(out_dtype).itemsize

    mode, ts, tv = _plan_tiles(B, H, S_eff, V, w_isz, x_isz, o_isz,
                               seq_tile, vocab_tile, _VMEM_BUDGET_BYTES)

    if mode == "resident":
        out = pl.pallas_call(
            functools.partial(_mlm_resident_kernel, compute_dtype=compute_dtype),
            out_shape=jax.ShapeDtypeStruct((B, V, S_eff), out_dtype),
            grid_spec=pltpu.PrefetchScalarGridSpec(
                num_scalar_prefetch=0,
                grid=(B, pl.cdiv(S_eff, ts)),
                in_specs=[
                    # Activation tiles read directly from the (B, H, S) layout.
                    pl.BlockSpec((1, H, ts), lambda b, s: (b, 0, s)),
                    # Weight / bias are grid-invariant: single resident VMEM copy.
                    pl.BlockSpec(memory_space=pltpu.MemorySpace.VMEM),
                    pl.BlockSpec(memory_space=pltpu.MemorySpace.VMEM),
                ],
                out_specs=pl.BlockSpec((1, V, ts), lambda b, s: (b, 0, s)),
            ),
            compiler_params=pltpu.CompilerParams(
                dimension_semantics=("parallel", "parallel"),
                vmem_limit_bytes=_VMEM_LIMIT_BYTES,
            ),
        )(x_k, w_k, b_k)
    else:
        n_kv = pl.cdiv(V, tv)
        out = pl.pallas_call(
            functools.partial(_mlm_stream_kernel, compute_dtype=compute_dtype,
                              v_total=V, v_tile=tv),
            out_shape=jax.ShapeDtypeStruct((B, V, S_eff), out_dtype),
            grid_spec=pltpu.PrefetchScalarGridSpec(
                num_scalar_prefetch=0,
                grid=(B, pl.cdiv(S_eff, ts), n_kv),
                in_specs=[
                    # x tile is constant along the vocab axis -> fetched once per (b, s).
                    pl.BlockSpec((1, H, ts), lambda b, s, kv: (b, 0, s)),
                    # Streamed weight / bias chunks.
                    pl.BlockSpec((tv, H), lambda b, s, kv: (kv, 0)),
                    pl.BlockSpec((tv, 1), lambda b, s, kv: (kv, 0)),
                ],
                # Output tile resident across the vocab axis; written at the last step.
                out_specs=pl.BlockSpec((1, V, ts), lambda b, s, kv: (b, 0, s)),
                scratch_shapes=[
                    pltpu.VMEM((n_kv, tv, ts), jnp.float32),   # logit chunks
                    pltpu.VMEM((1, ts), jnp.float32),          # running max
                    pltpu.VMEM((1, ts), jnp.float32),          # running sum-exp
                ],
            ),
            compiler_params=pltpu.CompilerParams(
                dimension_semantics=("parallel", "parallel", "arbitrary"),
                vmem_limit_bytes=_VMEM_LIMIT_BYTES,
            ),
        )(x_k, w_k, b_k)

    if S_eff != S:
        out = out[:, :, :S]
    return out


# ----------------------------- references & demo ------------------------------


def _reference_f32(x, weight, bias):
    # Pure-JAX mirror of the PyTorch module, all f32.
    runner = jnp.transpose(x, (0, 2, 1)).astype(jnp.float32)          # (B, S, H)
    runner = runner @ weight.astype(jnp.float32).T + bias.astype(jnp.float32)
    runner = jax.nn.log_softmax(runner, axis=-1)
    return jnp.transpose(runner, (0, 2, 1))                           # (B, V, S)


def _reference_bf16(x, weight, bias):
    # Same math as the kernel's fast path: bf16 operands, f32 accumulation/softmax.
    runner = jnp.transpose(x, (0, 2, 1)).astype(jnp.bfloat16)
    logits = jnp.dot(runner, weight.astype(jnp.bfloat16).T,
                     preferred_element_type=jnp.float32)
    logits = logits + bias.astype(jnp.float32)
    runner = jax.nn.log_softmax(logits, axis=-1)
    return jnp.transpose(runner, (0, 2, 1))


if __name__ == "__main__":
    key = jax.random.PRNGKey(0)

    def make_inputs(B, H, S, V, k):
        kx, kw, kb = jax.random.split(k, 3)
        x = jax.random.normal(kx, (B, H, S), dtype=jnp.float32)
        bound = 1.0 / (H ** 0.5)          # PyTorch-style uniform(-1/sqrt(H), 1/sqrt(H))
        w = jax.random.uniform(kw, (V, H), minval=-bound, maxval=bound,
                               dtype=jnp.float32)
        b = jax.random.uniform(kb, (V,), minval=-bound, maxval=bound,
                               dtype=jnp.float32)
        return x, w, b

    k1, k2, k3 = jax.random.split(key, 3)

    # 1) Module-sized config, exact f32 path (short-S padding path exercised).
    x, w, b = make_inputs(B=2, H=32, S=8, V=128, k=k1)
    out = jax.block_until_ready(masked_language_model(x, w, b, use_bf16=False))
    ref = _reference_f32(x, w, b)
    assert out.shape == (2, 128, 8), out.shape
    assert jnp.allclose(out, ref, atol=1e-4, rtol=1e-4), "f32 path mismatch"

    # 2) Same config, bf16 MXU path with a pre-cast bf16 weight (recommended usage).
    w_bf = w.astype(jnp.bfloat16)
    out_bf = jax.block_until_ready(masked_language_model(x, w_bf, b))
    assert jnp.allclose(out_bf, _reference_bf16(x, w, b), atol=2e-3, rtol=2e-3), \
        "bf16 path mismatch vs bf16-matched reference"
    assert jnp.allclose(out_bf, ref, atol=5e-2, rtol=5e-2), \
        "bf16 path too far from f32 reference"

    # 3) Vocab-streaming path (forced): 3 vocab chunks incl. a partial last chunk,
    #    bf16 compute, f32 output.
    x3, w3, b3 = make_inputs(B=2, H=256, S=384, V=640, k=k2)
    out3 = jax.block_until_ready(
        masked_language_model(x3, w3.astype(jnp.bfloat16), b3, vocab_tile=256))
    assert out3.shape == (2, 640, 384), out3.shape
    assert jnp.allclose(out3, _reference_bf16(x3, w3, b3), atol=2e-3, rtol=2e-3), \
        "streaming bf16 mismatch vs bf16-matched reference"
    assert jnp.allclose(out3, _reference_f32(x3, w3, b3), atol=5e-2, rtol=5e-2), \
        "streaming bf16 too far from f32 reference"

    # 4) Resident path with a multi-tile seq grid, masked boundary tile and the
    #    recommended bf16 output dtype.
    x4, w4, b4 = make_inputs(B=2, H=256, S=384, V=512, k=k3)
    out4 = jax.block_until_ready(
        masked_language_model(x4, w4.astype(jnp.bfloat16), b4,
                              seq_tile=256, out_dtype=jnp.bfloat16))
    assert out4.shape == (2, 512, 384), out4.shape
    assert jnp.allclose(out4.astype(jnp.float32), _reference_bf16(x4, w4, b4),
                        atol=5e-2, rtol=5e-2), \
        "tiled bf16-out mismatch vs bf16-matched reference"

    print("KERNEL_OK")
</pallas_src>

<mosaic_0001>
module attributes {stable_mosaic.version = 11 : i64} {
  func.func @_mlm_resident_kernel(%arg0: i32, %arg1: i32, %arg2: memref<1x32x128xf32, #tpu.memory_space<vmem>>, %arg3: memref<128x32xf32, #tpu.memory_space<vmem>>, %arg4: memref<128x1xf32, #tpu.memory_space<vmem>>, %arg5: memref<1x128x128xf32, #tpu.memory_space<vmem>>) attributes {dimension_semantics = [#tpu.dimension_semantics<parallel>, #tpu.dimension_semantics<parallel>], iteration_bounds = array<i64: 2, 1>, scalar_prefetch = 0 : i64, scratch_operands = 0 : i64, tpu.core_type = #tpu.core_type<tc>, window_params = [{transform_indices = @transform_0, window_bounds = array<i64: 1, 32, 128>}, {pipeline_mode = #tpu.pipeline_mode<synchronous>, transform_indices = @transform_1, window_bounds = array<i64: 128, 32>}, {pipeline_mode = #tpu.pipeline_mode<synchronous>, transform_indices = @transform_2, window_bounds = array<i64: 128, 1>}, {transform_indices = @transform_3, window_bounds = array<i64: 1, 128, 128>}]} {
    %c0 = arith.constant 0 : index
    %c0_0 = arith.constant 0 : index
    %c0_1 = arith.constant 0 : index
    %0 = vector.load %arg2[%c0, %c0_0, %c0_1] : memref<1x32x128xf32, #tpu.memory_space<vmem>>, vector<1x32x128xf32>
    %1 = vector.shape_cast %0 : vector<1x32x128xf32> to vector<32x128xf32>
    %c0_2 = arith.constant 0 : index
    %c0_3 = arith.constant 0 : index
    %2 = vector.load %arg3[%c0_2, %c0_3] : memref<128x32xf32, #tpu.memory_space<vmem>>, vector<128x32xf32>
    %cst = arith.constant dense<0.000000e+00> : vector<128x128xf32>
    %3 = tpu.matmul %2, %1, %cst {dimension_numbers = #tpu.dot_dimension_numbers<[1], [0], [0], [1], [0, 0, 1, 1], [], []>} : vector<128x32xf32>, vector<32x128xf32>, vector<128x128xf32> -> vector<128x128xf32>
    %c0_4 = arith.constant 0 : index
    %c0_5 = arith.constant 0 : index
    %4 = vector.load %arg4[%c0_4, %c0_5] : memref<128x1xf32, #tpu.memory_space<vmem>>, vector<128x1xf32>
    %5 = vector.broadcast %4 : vector<128x1xf32> to vector<128x128xf32>
    %6 = arith.addf %3, %5 : vector<128x128xf32>
    %cst_6 = arith.constant dense<0xFF800000> : vector<128xf32>
    %7 = vector.multi_reduction <maximumf>, %6, %cst_6 [0] : vector<128x128xf32> to vector<128xf32>
    %8 = vector.shape_cast %7 : vector<128xf32> to vector<1x128xf32>
    %9 = vector.broadcast %8 : vector<1x128xf32> to vector<128x128xf32>
    %10 = arith.subf %6, %9 : vector<128x128xf32>
    %11 = math.exp %10 : vector<128x128xf32>
    %cst_7 = arith.constant dense<0.000000e+00> : vector<128xf32>
    %12 = vector.multi_reduction <add>, %11, %cst_7 [0] : vector<128x128xf32> to vector<128xf32>
    %13 = vector.shape_cast %12 : vector<128xf32> to vector<1x128xf32>
    %14 = math.log %13 : vector<1x128xf32>
    %15 = vector.broadcast %14 : vector<1x128xf32> to vector<128x128xf32>
    %16 = arith.subf %10, %15 : vector<128x128xf32>
    %c0_8 = arith.constant 0 : index
    %c0_9 = arith.constant 0 : index
    %c0_10 = arith.constant 0 : index
    %17 = vector.load %arg5[%c0_8, %c0_9, %c0_10] : memref<1x128x128xf32, #tpu.memory_space<vmem>>, vector<1x128x128xf32>
    %18 = vector.shape_cast %17 : vector<1x128x128xf32> to vector<128x128xf32>
    %19 = vector.shape_cast %16 : vector<128x128xf32> to vector<1x128x128xf32>
    tpu.vector_store %arg5[%c0_8, %c0_9, %c0_10], %19 {strides = array<i32>} : memref<1x128x128xf32, #tpu.memory_space<vmem>>, vector<1x128x128xf32>,
    return
  }
  func.func @transform_0(%arg0: i32, %arg1: i32) -> (i32, i32, i32) {
    %c0_i32 = arith.constant 0 : i32
    %c0_i32_0 = arith.constant 0 : i32
    return %arg0, %c0_i32, %arg1 : i32, i32, i32
  }
  func.func @transform_1(%arg0: i32, %arg1: i32) -> (i32, i32) {
    %c0_i32 = arith.constant 0 : i32
    %c0_i32_0 = arith.constant 0 : i32
    %c0_i32_1 = arith.constant 0 : i32
    return %c0_i32, %c0_i32_0 : i32, i32
  }
  func.func @transform_2(%arg0: i32, %arg1: i32) -> (i32, i32) {
    %c0_i32 = arith.constant 0 : i32
    %c0_i32_0 = arith.constant 0 : i32
    %c0_i32_1 = arith.constant 0 : i32
    return %c0_i32, %c0_i32_0 : i32, i32
  }
  func.func @transform_3(%arg0: i32, %arg1: i32) -> (i32, i32, i32) {
    %c0_i32 = arith.constant 0 : i32
    %c0_i32_0 = arith.constant 0 : i32
    return %arg0, %c0_i32, %arg1 : i32, i32, i32
  }
}

</mosaic_0001>

<llo_original>
// kernel: masked_language_model.1
$region0: #{masked_language_model.1}
  #allocation0 [shape = 'u32[]', space=smem, size = 0x4, offset = 0x4, fixed_abs, tag = 'smem constant byte address 0x4 - core index']
  #allocation1 [shape = 'u32[72,128]{1,0:T(1,128)}', space=vmem, size = 0x9000, scoped, tag = 'internal scratch']
  %s0 = inlined_call_operand.vmem [shape: f32[2,32,128], index: 0, kind: input, shape index: {}]
  %s1 = inlined_call_operand.vmem [shape: f32[128,32], index: 1, kind: input, shape index: {}]
  %s2 = inlined_call_operand.vmem [shape: f32[128,1], index: 2, kind: input, shape index: {}]
  %s3 = inlined_call_operand.vmem [shape: f32[2,128,128], index: 3, kind: output, shape index: {}]
  %s4 = sld [smem:[#allocation0]]
  $region45: #{masked_language_model.1} parent=0
    _
  %s6 = ssub.s32 1, %s4
  %s7 = scalar_select 0, %s6, %s4
  loop: start=0, step=1, limit=4
  $region2: #{masked_language_model.1} parent=0 // loop_pre_header
    _
  $region3: #{masked_language_model.1} parent=0 // loop_header
    %s9 = sphi 0, %s13
    %p10 = scmp.ge.s32.totalorder %s9, 4
    %s16 = sphi 0, %s28
    %s17 = sphi 0, %s24
    %s18 = sphi 0, %s16
    %s19 = sphi 0, %s17
    %s20 = sphi 0, %s18
    %s21 = sphi 0, %s19
    %s33 = sphi 0, %s35
    %s36 = sphi 0, %s33
    %s37 = sphi 0, %s36
    %s53 = sphi 0, %s37
    %s57 = sphi 0, %s57
    %s59 = sphi 0, %s57
    %s60 = sphi 0, %s59
    %s74 = sphi 0, %s60
    %s78 = sphi 0, %s78
    %s80 = sphi 0, %s78
    %s81 = sphi 0, %s80
    %s95 = sphi 0, %s81
    %s103 = sphi 0, %s105
    %s106 = sphi 0, %s103
    %s107 = sphi 0, %s106
    %s123 = sphi 0, %s107
  $region4: #{masked_language_model.1} parent=0 // loop_header_branch
    %12 = sbr.rel (%p10) target = $region8
  $region5: #{masked_language_model.1} parent=0 // loop_body
    %s14 = ssub.s32 %s9, 1
    %s15 = ssub.s32 %s9, 2
    %s22 = sadd.s32 1, %s17
    %p23 = scmp.ge.s32.totalorder %s22, 1
    %s24 = scalar_select %p23, 0, %s22
    %s25 = sadd.s32 1, %s16
    %s26 = scalar_select %p23, %s25, %s16
    %p27 = scmp.ge.s32.totalorder %s26, 2
    %s28 = scalar_select %p27, 0, %s26
    %s29 = ssub.s32 %s16, %s28
    %s30 = ssub.s32 %s17, %s24
    %s31 = sor.u32 %s29, %s30
    %p32 = scmp.eq.s32.totalorder %s31, 0
    %s34 = sadd.s32 %s33, 1
    %s35 = scalar_select %p32, %s33, %s34
    %p38 = pneg %p32
    %p39 = scmp.eq.s32.totalorder %s9, 1
    %p40 = por %p38, %p39
    %p41 = scmp.ne.s32.totalorder %s33, %s36
    %p42 = scmp.eq.s32.totalorder %s9, 0
    %p43 = por %p41, %p42
    %p44 = scmp.ne.s32.totalorder %s33, %s36
    %p45 = scmp.eq.s32.totalorder %s14, 1
    %p46 = por %p44, %p45
    %p47 = scmp.ne.s32.totalorder %s36, %s37
    %p48 = scmp.eq.s32.totalorder %s14, 0
    %p49 = por %p47, %p48
    %p50 = scmp.ne.s32.totalorder %s36, %s37
    %p51 = scmp.eq.s32.totalorder %s15, 1
    %p52 = por %p50, %p51
    %p54 = scmp.ne.s32.totalorder %s37, %s53
    %p55 = scmp.eq.s32.totalorder %s15, 0
    %p56 = por %p54, %p55
    %s58 = sadd.s32 %s57, 1
    %p61 = scmp.eq.s32.totalorder %s9, 1
    %p62 = scmp.ne.s32.totalorder %s57, %s59
    %p63 = scmp.eq.s32.totalorder %s9, 0
    %p64 = por %p62, %p63
    %p65 = scmp.ne.s32.totalorder %s57, %s59
    %p66 = scmp.eq.s32.totalorder %s14, 1
    %p67 = por %p65, %p66
    %p68 = scmp.ne.s32.totalorder %s59, %s60
    %p69 = scmp.eq.s32.totalorder %s14, 0
    %p70 = por %p68, %p69
    %p71 = scmp.ne.s32.totalorder %s59, %s60
    %p72 = scmp.eq.s32.totalorder %s15, 1
    %p73 = por %p71, %p72
    %p75 = scmp.ne.s32.totalorder %s60, %s74
    %p76 = scmp.eq.s32.totalorder %s15, 0
    %p77 = por %p75, %p76
    %s79 = sadd.s32 %s78, 1
    %p82 = scmp.eq.s32.totalorder %s9, 1
    %p83 = scmp.ne.s32.totalorder %s78, %s80
    %p84 = scmp.eq.s32.totalorder %s9, 0
    %p85 = por %p83, %p84
    %p86 = scmp.ne.s32.totalorder %s78, %s80
    %p87 = scmp.eq.s32.totalorder %s14, 1
    %p88 = por %p86, %p87
    %p89 = scmp.ne.s32.totalorder %s80, %s81
    %p90 = scmp.eq.s32.totalorder %s14, 0
    %p91 = por %p89, %p90
    %p92 = scmp.ne.s32.totalorder %s80, %s81
    %p93 = scmp.eq.s32.totalorder %s15, 1
    %p94 = por %p92, %p93
    %p96 = scmp.ne.s32.totalorder %s81, %s95
    %p97 = scmp.eq.s32.totalorder %s15, 0
    %p98 = por %p96, %p97
    %s99 = ssub.s32 %s16, %s28
    %s100 = ssub.s32 %s17, %s24
    %s101 = sor.u32 %s99, %s100
    %p102 = scmp.eq.s32.totalorder %s101, 0
    %s104 = sadd.s32 %s103, 1
    %s105 = scalar_select %p102, %s103, %s104
    %p108 = pneg %p102
    %p109 = scmp.eq.s32.totalorder %s9, 1
    %p110 = por %p108, %p109
    %p111 = scmp.ne.s32.totalorder %s103, %s106
    %p112 = scmp.eq.s32.totalorder %s9, 0
    %p113 = por %p111, %p112
    %p114 = scmp.ne.s32.totalorder %s103, %s106
    %p115 = scmp.eq.s32.totalorder %s14, 1
    %p116 = por %p114, %p115
    %p117 = scmp.ne.s32.totalorder %s106, %s107
    %p118 = scmp.eq.s32.totalorder %s14, 0
    %p119 = por %p117, %p118
    %p120 = scmp.ne.s32.totalorder %s106, %s107
    %p121 = scmp.eq.s32.totalorder %s15, 1
    %p122 = por %p120, %p121
    %p124 = scmp.ne.s32.totalorder %s107, %s123
    %p125 = scmp.eq.s32.totalorder %s15, 0
    %p126 = por %p124, %p125
    %p127 = scmp.le.s32.totalorder 1, %s9
    %p128 = scmp.lt.s32.totalorder %s9, 3
    %p129 = pnand %p127, %p128
    %p130 = pneg %p129
    // Predicated region
    $region9: #{masked_language_model.1} parent=5 // pred_check
      _
    $region10: #{masked_language_model.1} parent=5 // pred_check_branch
      %132 = sbr.rel (%p129) target = $region12
    $region11: #{masked_language_model.1} parent=5 // pred_region
      %s133 = ssub.s32 %s9, 1
      // Predicated region
      $region13: #{masked_language_model.1} parent=11 // pred_check
        %p134 = pneg %p70
      $region14: #{masked_language_model.1} parent=11 // pred_check_branch
        %136 = sbr.rel (%p134) target = $region16
      $region15: #{masked_language_model.1} parent=11 // pred_region
        _
      $region16: #{masked_language_model.1} parent=11 // pred_fallthru
        _
      // Predicated region
      $region17: #{masked_language_model.1} parent=11 // pred_check
        %p137 = pneg %p91
      $region18: #{masked_language_model.1} parent=11 // pred_check_branch
        %139 = sbr.rel (%p137) target = $region20
      $region19: #{masked_language_model.1} parent=11 // pred_region
        _
      $region20: #{masked_language_model.1} parent=11 // pred_fallthru
        _
    $region12: #{masked_language_model.1} parent=5 // pred_fallthru
      _
    %p140 = scmp.lt.s32.totalorder %s9, 2
    // Predicated region
    $region21: #{masked_language_model.1} parent=5 // pred_check
      %p141 = pneg %p140
    $region22: #{masked_language_model.1} parent=5 // pred_check_branch
      %143 = sbr.rel (%p141) target = $region24
    $region23: #{masked_language_model.1} parent=5 // pred_region
      // Predicated region
      $region25: #{masked_language_model.1} parent=23 // pred_check
        %p144 = pneg %p43
      $region26: #{masked_language_model.1} parent=23 // pred_check_branch
        %146 = sbr.rel (%p144) target = $region28
      $region27: #{masked_language_model.1} parent=23 // pred_region
        %p147 = scmp.lt.s32.totalorder %s16, 1
        %s148 = scalar_select %p147, %s16, 1
        %p149 = scmp.lt.s32.totalorder %s17, 0
        %s150 = scalar_select %p149, %s17, 0
        %s151 = smul.addr %s148, 4
        %s152 = sadd.s32 %s150, %s151
        %s153 = smul.addr %s152, 8
        %s154 = scalar_lea.vmem %s0, %s153
      $region28: #{masked_language_model.1} parent=23 // pred_fallthru
        _
    $region24: #{masked_language_model.1} parent=5 // pred_fallthru
      _
    %p155 = scmp.le.s32.totalorder 1, %s9
    %p156 = scmp.lt.s32.totalorder %s9, 3
    %p157 = pnand %p155, %p156
    %p158 = pneg %p157
    // Predicated region
    $region29: #{masked_language_model.1} parent=5 // pred_check
      _
    $region30: #{masked_language_model.1} parent=5 // pred_check_branch
      %160 = sbr.rel (%p157) target = $region32
    $region31: #{masked_language_model.1} parent=5 // pred_region
      %s161 = ssub.s32 %s9, 1
      %p162 = scmp.lt.s32.totalorder %s18, 1
      %s163 = scalar_select %p162, %s18, 1
      %p164 = scmp.lt.s32.totalorder %s19, 0
      %s165 = scalar_select %p164, %s19, 0
      %s166 = smul.addr %s163, 4
      %s167 = sadd.s32 %s165, %s166
      %s168 = smul.addr %s167, 8
      %s169 = scalar_lea.vmem %s0, %s168
      %p170 = pneg %p49
      %p171 = pneg %p46
      %p172 = pneg %p70
      %p173 = pneg %p67
      %p174 = pneg %p91
      %p175 = pneg %p88
      %p176 = pneg %p119
      %p177 = pneg %p116
      %p178 = scmp.lt.s32.totalorder %s18, 1
      %s179 = scalar_select %p178, %s18, 1
      %p180 = scmp.lt.s32.totalorder %s19, 0
      %s181 = scalar_select %p180, %s19, 0
      %s182 = smul.addr %s179, 16
      %s183 = sadd.s32 %s181, %s182
      %s184 = smul.addr %s183, 8
      %s185 = scalar_lea.vmem %s3, %s184
      %p186 = scmp.lt.s32.totalorder %s18, 1
      %s187 = scalar_select %p186, %s18, 1
      %p188 = scmp.lt.s32.totalorder %s19, 0
      %s189 = scalar_select %p188, %s19, 0
      %s190 = smul.addr %s187, 4
      %s191 = sadd.s32 %s189, %s190
      %s192 = smul.addr %s191, 8
      %s193 = scalar_lea.vmem %s0, %s192
      %p194 = scmp.lt.s32.totalorder %s18, 1
      %s195 = scalar_select %p194, %s18, 1
      %p196 = scmp.lt.s32.totalorder %s19, 0
      %s197 = scalar_select %p196, %s19, 0
      %s198 = smul.addr %s195, 16
      %s199 = sadd.s32 %s197, %s198
      %s200 = smul.addr %s199, 8
      %s201 = scalar_lea.vmem %s3, %s200
      %v202 = vld [vmem:[%s193] sm:$0xff]
      %v203 = vld [vmem:[%s193 + $0x8] sm:$0xff]
      %v204 = vld [vmem:[%s193 + $0x10] sm:$0xff]
      %v205 = vld [vmem:[%s193 + $0x18] sm:$0xff]
      %v206 = vld [vmem:[%s1] sm:$0xff]
      %v207 = vld [vmem:[%s1 + $0x8] sm:$0xff]
      %v208 = vld [vmem:[%s1 + $0x10] sm:$0xff]
      %v209 = vld [vmem:[%s1 + $0x18] sm:$0xff]
      %v210 = vld [vmem:[%s1 + $0x20] sm:$0xff]
      %v211 = vld [vmem:[%s1 + $0x28] sm:$0xff]
      %v212 = vld [vmem:[%s1 + $0x30] sm:$0xff]
      %v213 = vld [vmem:[%s1 + $0x38] sm:$0xff]
      %v214 = vld [vmem:[%s1 + $0x40] sm:$0xff]
      %v215 = vld [vmem:[%s1 + $0x48] sm:$0xff]
      %v216 = vld [vmem:[%s1 + $0x50] sm:$0xff]
      %v217 = vld [vmem:[%s1 + $0x58] sm:$0xff]
      %v218 = vld [vmem:[%s1 + $0x60] sm:$0xff]
      %v219 = vld [vmem:[%s1 + $0x68] sm:$0xff]
      %v220 = vld [vmem:[%s1 + $0x70] sm:$0xff]
      %v221 = vld [vmem:[%s1 + $0x78] sm:$0xff]
      %v222 = vld [vmem:[%s2] sm:$0xff]
      %v223 = vld [vmem:[%s2 + $0x8] sm:$0xff]
      %v224 = vld [vmem:[%s2 + $0x10] sm:$0xff]
      %v225 = vld [vmem:[%s2 + $0x18] sm:$0xff]
      %v226 = vld [vmem:[%s2 + $0x20] sm:$0xff]
      %v227 = vld [vmem:[%s2 + $0x28] sm:$0xff]
      %v228 = vld [vmem:[%s2 + $0x30] sm:$0xff]
      %v229 = vld [vmem:[%s2 + $0x38] sm:$0xff]
      %v230 = vld [vmem:[%s2 + $0x40] sm:$0xff]
      %v231 = vld [vmem:[%s2 + $0x48] sm:$0xff]
      %v232 = vld [vmem:[%s2 + $0x50] sm:$0xff]
      %v233 = vld [vmem:[%s2 + $0x58] sm:$0xff]
      %v234 = vld [vmem:[%s2 + $0x60] sm:$0xff]
      %v235 = vld [vmem:[%s2 + $0x68] sm:$0xff]
      %v236 = vld [vmem:[%s2 + $0x70] sm:$0xff]
      %v237 = vld [vmem:[%s2 + $0x78] sm:$0xff]
      %239 = vset.pattern.permute.xlu0 0
      %240 = vperm.xlu0 %239, %v222
      %v241 = vpop.permute.xlu0 %240
      %244 = vset.pattern.permute.xlu0 0
      %245 = vperm.xlu0 %244, %v223
      %v246 = vpop.permute.xlu0 %245
      %249 = vset.pattern.permute.xlu0 0
      %250 = vperm.xlu0 %249, %v224
      %v251 = vpop.permute.xlu0 %250
      %254 = vset.pattern.permute.xlu0 0
      %255 = vperm.xlu0 %254, %v225
      %v256 = vpop.permute.xlu0 %255
      %259 = vset.pattern.permute.xlu0 0
      %260 = vperm.xlu0 %259, %v226
      %v261 = vpop.permute.xlu0 %260
      %264 = vset.pattern.permute.xlu0 0
      %265 = vperm.xlu0 %264, %v227
      %v266 = vpop.permute.xlu0 %265
      %269 = vset.pattern.permute.xlu0 0
      %270 = vperm.xlu0 %269, %v228
      %v271 = vpop.permute.xlu0 %270
      %274 = vset.pattern.permute.xlu0 0
      %275 = vperm.xlu0 %274, %v229
      %v276 = vpop.permute.xlu0 %275
      %279 = vset.pattern.permute.xlu0 0
      %280 = vperm.xlu0 %279, %v230
      %v281 = vpop.permute.xlu0 %280
      %284 = vset.pattern.permute.xlu0 0
      %285 = vperm.xlu0 %284, %v231
      %v286 = vpop.permute.xlu0 %285
      %289 = vset.pattern.permute.xlu0 0
      %290 = vperm.xlu0 %289, %v232
      %v291 = vpop.permute.xlu0 %290
      %294 = vset.pattern.permute.xlu0 0
      %295 = vperm.xlu0 %294, %v233
      %v296 = vpop.permute.xlu0 %295
      %299 = vset.pattern.permute.xlu0 0
      %300 = vperm.xlu0 %299, %v234
      %v301 = vpop.permute.xlu0 %300
      %304 = vset.pattern.permute.xlu0 0
      %305 = vperm.xlu0 %304, %v235
      %v306 = vpop.permute.xlu0 %305
      %309 = vset.pattern.permute.xlu0 0
      %310 = vperm.xlu0 %309, %v236
      %v311 = vpop.permute.xlu0 %310
      %314 = vset.pattern.permute.xlu0 0
      %315 = vperm.xlu0 %314, %v237
      %v316 = vpop.permute.xlu0 %315
      %vm318 = vcmask 261120
      %v320 = vsel %vm318, %v206, 0
      %v323 = vsel %vm318, %v207, 0
      %v326 = vsel %vm318, %v208, 0
      %v329 = vsel %vm318, %v209, 0
      %v332 = vsel %vm318, %v210, 0
      %v335 = vsel %vm318, %v211, 0
      %v338 = vsel %vm318, %v212, 0
      %v341 = vsel %vm318, %v213, 0
      %v344 = vsel %vm318, %v214, 0
      %v347 = vsel %vm318, %v215, 0
      %v350 = vsel %vm318, %v216, 0
      %v353 = vsel %vm318, %v217, 0
      %v356 = vsel %vm318, %v218, 0
      %v359 = vsel %vm318, %v219, 0
      %v362 = vsel %vm318, %v220, 0
      %v365 = vsel %vm318, %v221, 0
      %367 = vmatpush.msra.mxu0 0.0
      %368 = vmatpush.msra.mxu0 0.0
      %369 = vmatpush.msra.mxu0 0.0
      %370 = vmatpush.msra.mxu0 0.0
      %371 = vmatpush.msra.mxu0 0.0
      %372 = vmatpush.msra.mxu0 0.0
      %373 = vmatpush.msra.mxu0 0.0
      %374 = vmatpush.msra.mxu0 0.0
      %375 = vmatpush.msra.mxu0 0.0
      %376 = vmatpush.msra.mxu0 0.0
      %377 = vmatpush.msra.mxu0 0.0
      %378 = vmatpush.msra.mxu0 0.0
      %379 = vmatpush.msra.mxu0 %v205
      %380 = vmatpush.msra.mxu0 %v204
      %381 = vmatpush.msra.mxu0 %v203
      %382 = vmatpush.msra.mxu0 %v202
      %383 = vmatmul.f32.gmra.mxu0 %v320
      %v384 = vpop.f32.mrf.mxu0
      %v385 = vadd.f32 %v241, %v384
      %386 = vmatmul.f32.gmra.mxu0 %v323
      %v387 = vpop.f32.mrf.mxu0
      %v388 = vadd.f32 %v246, %v387
      %389 = vmatmul.f32.gmra.mxu0 %v326
      %v390 = vpop.f32.mrf.mxu0
      %v391 = vadd.f32 %v251, %v390
      %392 = vmatmul.f32.gmra.mxu0 %v329
      %v393 = vpop.f32.mrf.mxu0
      %v394 = vadd.f32 %v256, %v393
      %395 = vmatmul.f32.gmra.mxu0 %v332
      %v396 = vpop.f32.mrf.mxu0
      %v397 = vadd.f32 %v261, %v396
      %398 = vmatmul.f32.gmra.mxu0 %v335
      %v399 = vpop.f32.mrf.mxu0
      %v400 = vadd.f32 %v266, %v399
      %401 = vmatmul.f32.gmra.mxu0 %v338
      %v402 = vpop.f32.mrf.mxu0
      %v403 = vadd.f32 %v271, %v402
      %404 = vmatmul.f32.gmra.mxu0 %v341
      %v405 = vpop.f32.mrf.mxu0
      %v406 = vadd.f32 %v276, %v405
      %407 = vmatmul.f32.gmra.mxu0 %v344
      %v408 = vpop.f32.mrf.mxu0
      %v409 = vadd.f32 %v281, %v408
      %410 = vmatmul.f32.gmra.mxu0 %v347
      %v411 = vpop.f32.mrf.mxu0
      %v412 = vadd.f32 %v286, %v411
      %413 = vmatmul.f32.gmra.mxu0 %v350
      %v414 = vpop.f32.mrf.mxu0
      %v415 = vadd.f32 %v291, %v414
      %416 = vmatmul.f32.gmra.mxu0 %v353
      %v417 = vpop.f32.mrf.mxu0
      %v418 = vadd.f32 %v296, %v417
      %419 = vmatmul.f32.gmra.mxu0 %v356
      %v420 = vpop.f32.mrf.mxu0
      %v421 = vadd.f32 %v301, %v420
      %422 = vmatmul.f32.gmra.mxu0 %v359
      %v423 = vpop.f32.mrf.mxu0
      %v424 = vadd.f32 %v306, %v423
      %425 = vmatmul.f32.gmra.mxu0 %v362
      %v426 = vpop.f32.mrf.mxu0
      %v427 = vadd.f32 %v311, %v426
      %428 = vmatmul.f32.gmra.mxu0 %v365
      %v429 = vpop.f32.mrf.mxu0
      %v430 = vadd.f32 %v316, %v429
      %431 = vdwg.mxu0
      %v432 = vmax.f32 %v385, %v397
      %v433 = vmax.f32 %v388, %v400
      %v434 = vmax.f32 %v391, %v403
      %v435 = vmax.f32 %v394, %v406
      %v436 = vmax.f32 %v432, %v409
      %v437 = vmax.f32 %v433, %v412
      %v438 = vmax.f32 %v434, %v415
      %v439 = vmax.f32 %v435, %v418
      %v440 = vmax.f32 %v436, %v421
      %v441 = vmax.f32 %v437, %v424
      %v442 = vmax.f32 %v438, %v427
      %v443 = vmax.f32 %v439, %v430
      %v444 = vmax.f32 %v440, %v441
      %v445 = vmax.f32 %v442, %v443
      %v446 = vmax.f32 %v444, %v445
      %v447 = vrot.slane %v446, 4
      %v448 = vmax.f32 %v446, %v447
      %v449 = vrot.slane %v448, 2
      %v450 = vmax.f32 %v448, %v449
      %v451 = vrot.slane %v450, 1
      %v452 = vmax.f32 %v450, %v451
      %v453 = vsub.f32 %v385, %v452
      %v454 = vsub.f32 %v388, %v452
      %v455 = vsub.f32 %v391, %v452
      %v456 = vsub.f32 %v394, %v452
      %v457 = vsub.f32 %v397, %v452
      %v458 = vsub.f32 %v400, %v452
      %v459 = vsub.f32 %v403, %v452
      %v460 = vsub.f32 %v406, %v452
      %v461 = vsub.f32 %v409, %v452
      %v462 = vsub.f32 %v412, %v452
      %v463 = vsub.f32 %v415, %v452
      %v464 = vsub.f32 %v418, %v452
      %v465 = vsub.f32 %v421, %v452
      %v466 = vsub.f32 %v424, %v452
      %v467 = vsub.f32 %v427, %v452
      %v468 = vsub.f32 %v430, %v452
      %v469 = vmul.f32 %v453, 1.442695
      %v470 = vpow.pop %v469
      %v471 = vmul.f32 %v454, 1.442695
      %v472 = vpow.pop %v471
      %v473 = vmul.f32 %v455, 1.442695
      %v474 = vpow.pop %v473
      %v475 = vmul.f32 %v456, 1.442695
      %v476 = vpow.pop %v475
      %v477 = vmul.f32 %v457, 1.442695
      %v478 = vpow.pop %v477
      %v479 = vmul.f32 %v458, 1.442695
      %v480 = vpow.pop %v479
      %v481 = vmul.f32 %v459, 1.442695
      %v482 = vpow.pop %v481
      %v483 = vmul.f32 %v460, 1.442695
      %v484 = vpow.pop %v483
      %v485 = vmul.f32 %v461, 1.442695
      %v486 = vpow.pop %v485
      %v487 = vmul.f32 %v462, 1.442695
      %v488 = vpow.pop %v487
      %v489 = vmul.f32 %v463, 1.442695
      %v490 = vpow.pop %v489
      %v491 = vmul.f32 %v464, 1.442695
      %v492 = vpow.pop %v491
      %v493 = vmul.f32 %v465, 1.442695
      %v494 = vpow.pop %v493
      %v495 = vmul.f32 %v466, 1.442695
      %v496 = vpow.pop %v495
      %v497 = vmul.f32 %v467, 1.442695
      %v498 = vpow.pop %v497
      %v499 = vmul.f32 %v468, 1.442695
      %v500 = vpow.pop %v499
      %v501 = vadd.f32 %v470, %v472
      %v502 = vadd.f32 %v501, %v474
      %v503 = vadd.f32 %v502, %v476
      %v504 = vadd.f32 %v503, %v478
      %v505 = vadd.f32 %v504, %v480
      %v506 = vadd.f32 %v505, %v482
      %v507 = vadd.f32 %v506, %v484
      %v508 = vadd.f32 %v507, %v486
      %v509 = vadd.f32 %v508, %v488
      %v510 = vadd.f32 %v509, %v490
      %v511 = vadd.f32 %v510, %v492
      %v512 = vadd.f32 %v511, %v494
      %v513 = vadd.f32 %v512, %v496
      %v514 = vadd.f32 %v513, %v498
      %v515 = vadd.f32 %v514, %v500
      %v516 = vrot.slane %v515, 4
      %v517 = vadd.f32 %v515, %v516
      %v518 = vrot.slane %v517, 2
      %v519 = vadd.f32 %v517, %v518
      %v520 = vrot.slane %v519, 1
      %v521 = vadd.f32 %v519, %v520
      %v522 = vlog2.pop %v521
      %v523 = vmul.f32 %v522, 0.6931472
      %v524 = vsub.f32 %v453, %v523
      %v525 = vsub.f32 %v454, %v523
      %v526 = vsub.f32 %v455, %v523
      %v527 = vsub.f32 %v456, %v523
      %v528 = vsub.f32 %v457, %v523
      %v529 = vsub.f32 %v458, %v523
      %v530 = vsub.f32 %v459, %v523
      %v531 = vsub.f32 %v460, %v523
      %v532 = vsub.f32 %v461, %v523
      %v533 = vsub.f32 %v462, %v523
      %v534 = vsub.f32 %v463, %v523
      %v535 = vsub.f32 %v464, %v523
      %v536 = vsub.f32 %v465, %v523
      %v537 = vsub.f32 %v466, %v523
      %v538 = vsub.f32 %v467, %v523
      %v539 = vsub.f32 %v468, %v523
      %540 = vst [vmem:[%s201] sm:$0xff] %v524
      %541 = vst [vmem:[%s201 + $0x8] sm:$0xff] %v525
      %542 = vst [vmem:[%s201 + $0x10] sm:$0xff] %v526
      %543 = vst [vmem:[%s201 + $0x18] sm:$0xff] %v527
      %544 = vst [vmem:[%s201 + $0x20] sm:$0xff] %v528
      %545 = vst [vmem:[%s201 + $0x28] sm:$0xff] %v529
      %546 = vst [vmem:[%s201 + $0x30] sm:$0xff] %v530
      %547 = vst [vmem:[%s201 + $0x38] sm:$0xff] %v531
      %548 = vst [vmem:[%s201 + $0x40] sm:$0xff] %v532
      %549 = vst [vmem:[%s201 + $0x48] sm:$0xff] %v533
      %550 = vst [vmem:[%s201 + $0x50] sm:$0xff] %v534
      %551 = vst [vmem:[%s201 + $0x58] sm:$0xff] %v535
      %552 = vst [vmem:[%s201 + $0x60] sm:$0xff] %v536
      %553 = vst [vmem:[%s201 + $0x68] sm:$0xff] %v537
      %554 = vst [vmem:[%s201 + $0x70] sm:$0xff] %v538
      %555 = vst [vmem:[%s201 + $0x78] sm:$0xff] %v539
      %p556 = scmp.lt.s32.totalorder %s18, 1
      %s557 = scalar_select %p556, %s18, 1
      %p558 = scmp.lt.s32.totalorder %s19, 0
      %s559 = scalar_select %p558, %s19, 0
      %s560 = smul.addr %s557, 16
      %s561 = sadd.s32 %s559, %s560
      %s562 = smul.addr %s561, 8
      %s563 = scalar_lea.vmem %s3, %s562
      // Predicated region
      $region33: #{masked_language_model.1} parent=31 // pred_check
        %p564 = pneg %p116
      $region34: #{masked_language_model.1} parent=31 // pred_check_branch
        %566 = sbr.rel (%p564) target = $region36
      $region35: #{masked_language_model.1} parent=31 // pred_region
        _
      $region36: #{masked_language_model.1} parent=31 // pred_fallthru
        _
    $region32: #{masked_language_model.1} parent=5 // pred_fallthru
      _
    %p567 = scmp.le.s32.totalorder 2, %s9
    // Predicated region
    $region37: #{masked_language_model.1} parent=5 // pred_check
      %p568 = pneg %p567
    $region38: #{masked_language_model.1} parent=5 // pred_check_branch
      %570 = sbr.rel (%p568) target = $region40
    $region39: #{masked_language_model.1} parent=5 // pred_region
      %s571 = ssub.s32 %s9, 2
      // Predicated region
      $region41: #{masked_language_model.1} parent=39 // pred_check
        %p572 = pneg %p122
      $region42: #{masked_language_model.1} parent=39 // pred_check_branch
        %574 = sbr.rel (%p572) target = $region44
      $region43: #{masked_language_model.1} parent=39 // pred_region
        %p575 = scmp.lt.s32.totalorder %s20, 1
        %s576 = scalar_select %p575, %s20, 1
        %p577 = scmp.lt.s32.totalorder %s21, 0
        %s578 = scalar_select %p577, %s21, 0
        %s579 = smul.addr %s576, 16
        %s580 = sadd.s32 %s578, %s579
        %s581 = smul.addr %s580, 8
        %s582 = scalar_lea.vmem %s3, %s581
      $region44: #{masked_language_model.1} parent=39 // pred_fallthru
        _
    $region40: #{masked_language_model.1} parent=5 // pred_fallthru
      _
  $region6: #{masked_language_model.1} parent=0 // loop_footer
    %s13 = sadd.s32 1, %s9
  $region7: #{masked_language_model.1} parent=0 // loop_footer_branch
    %8 = sbr.rel target = $region3
  $region8: #{masked_language_model.1} parent=0 // loop_exit
    _

</llo_original>
